<compile_context>
chip_gen: v7x
topology: tpu7x:2x2x1
jax: 0.10.0
libtpu: 0.0.40
codegen_flags: <defaults>
</compile_context>

<pallas_src>
import math

import jax
import jax.numpy as jnp
from jax.experimental import pallas as pl
from jax.experimental.pallas import tpu as pltpu


def _round_up(x: int, m: int) -> int:
    return ((x + m - 1) // m) * m


# ----------------- fused kernel: out[i,:] = (sum_k A[i,k] @ ((feat_k*nsrc_k)@W)) * ndst_i + b
def _gcn_fused_kernel(adj_ref, feat_ref, nsrc_ref, w_ref, ndst_ref, bias_ref,
                      out_ref, acc_ref):
    k = pl.program_id(1)

    @pl.when(k == 0)
    def _():
        acc_ref[...] = jnp.zeros_like(acc_ref)

    # h_k = (feat_k * src_norm_k) @ W   (src-norm in f32, MXU in bf16, f32 acc)
    fk = feat_ref[...] * nsrc_ref[...]                              # (tk, F_in) f32
    h_k = jnp.dot(fk.astype(jnp.bfloat16), w_ref[...],
                  preferred_element_type=jnp.float32)               # (tk, F_pad) f32

    # acc += A[i, k] @ h_k              (bf16 MXU inputs, f32 accumulation)
    acc_ref[...] += jnp.dot(adj_ref[...], h_k.astype(jnp.bfloat16),
                            preferred_element_type=jnp.float32)

    @pl.when(k == pl.num_programs(1) - 1)
    def _():
        out_ref[...] = acc_ref[...] * ndst_ref[...] + bias_ref[...]


def gcn_forward(feat, adj, norm_out, norm_in, weight, bias,
                *, tile_m=256, tile_k=512):
    """feat: (N, F_in)  adj: (N_dst, N_src)  norm_*: (N,)  weight: (F_in, F_out)."""
    N, F_in = feat.shape
    F_out = weight.shape[1]

    # --- tile sizes (shrunk for small graphs, kept (8,128)/MXU aligned) ------
    tm = min(tile_m, _round_up(N, 8))        # dst-row (sublane) tile
    tk = min(tile_k, _round_up(N, 128))      # src-node (lane / K) tile
    n_pad = _round_up(N, math.lcm(tm, tk))
    f_pad = _round_up(F_out, 128)            # lane-dense output / weight cols

    # --- zero-pad inputs (padded src cols of A are 0 -> contribute nothing;
    #     padded dst rows / feature cols are sliced off afterwards) -----------
    feat_p = jnp.zeros((n_pad, F_in), jnp.float32).at[:N].set(
        feat.astype(jnp.float32))
    adj_p = jnp.zeros((n_pad, n_pad), jnp.bfloat16).at[:N, :N].set(
        adj.astype(jnp.bfloat16))
    nsrc_p = jnp.zeros((n_pad, 1), jnp.float32).at[:N].set(
        norm_out.reshape(N, 1).astype(jnp.float32))
    ndst_p = jnp.zeros((n_pad, 1), jnp.float32).at[:N].set(
        norm_in.reshape(N, 1).astype(jnp.float32))
    w_p = jnp.zeros((F_in, f_pad), jnp.bfloat16).at[:, :F_out].set(
        weight.astype(jnp.bfloat16))
    bias_p = jnp.zeros((1, f_pad), jnp.float32).at[:, :F_out].set(
        bias.reshape(1, F_out).astype(jnp.float32))

    grid = (n_pad // tm, n_pad // tk)

    out_p = pl.pallas_call(
        _gcn_fused_kernel,
        out_shape=jax.ShapeDtypeStruct((n_pad, f_pad), jnp.float32),
        grid=grid,
        in_specs=[
            pl.BlockSpec((tm, tk), lambda i, k: (i, k)),        # A tile
            pl.BlockSpec((tk, F_in), lambda i, k: (k, 0)),      # feat src tile
            pl.BlockSpec((tk, 1), lambda i, k: (k, 0)),         # src norm tile
            pl.BlockSpec((F_in, f_pad), lambda i, k: (0, 0)),   # W (resident)
            pl.BlockSpec((tm, 1), lambda i, k: (i, 0)),         # dst norm tile
            pl.BlockSpec((1, f_pad), lambda i, k: (0, 0)),      # bias (resident)
        ],
        out_specs=pl.BlockSpec((tm, f_pad), lambda i, k: (i, 0)),
        scratch_shapes=[pltpu.VMEM((tm, f_pad), jnp.float32)],
        compiler_params=pltpu.CompilerParams(
            dimension_semantics=("parallel", "arbitrary"),
            vmem_limit_bytes=48 * 1024 * 1024),
    )(adj_p, feat_p, nsrc_p, w_p, ndst_p, bias_p)

    return out_p[:N, :F_out]


if __name__ == "__main__":
    key = jax.random.PRNGKey(0)
    N, F_in, F_out = 64, 32, 16          # in_feats > out_feats -> transform-first path

    k_feat, k_mask, k_ew, k_w = jax.random.split(key, 4)

    # Node features
    feat = jax.random.normal(k_feat, (N, F_in), dtype=jnp.float32)

    # Deterministic random graph: ~20% density, edge weights in [0.5, 1.5)
    mask = (jax.random.uniform(k_mask, (N, N)) < 0.2).astype(jnp.float32)
    edge_w = jax.random.uniform(k_ew, (N, N), minval=0.5, maxval=1.5,
                                dtype=jnp.float32)
    adj = mask * edge_w                   # (N_dst, N_src)

    # Unweighted degrees, clamp(min=1), norm='both' -> deg^{-1/2}
    out_deg = jnp.maximum(mask.sum(axis=0), 1.0)   # out-degree of src node
    in_deg = jnp.maximum(mask.sum(axis=1), 1.0)    # in-degree of dst node
    norm_out = out_deg ** -0.5
    norm_in = in_deg ** -0.5

    # Parameters: xavier_uniform weight, zero bias (matches reset_parameters)
    bound = (6.0 / (F_in + F_out)) ** 0.5
    weight = jax.random.uniform(k_w, (F_in, F_out), minval=-bound, maxval=bound,
                                dtype=jnp.float32)
    bias = jnp.zeros((F_out,), dtype=jnp.float32)

    out = gcn_forward(feat, adj, norm_out, norm_in, weight, bias)
    out = jax.block_until_ready(out)

    # Pure-JAX f32 reference (kernel uses bf16 MXU inputs -> loose tolerance)
    ref = (feat * norm_out[:, None]) @ weight
    ref = adj @ ref
    ref = ref * norm_in[:, None] + bias

    assert out.shape == (N, F_out)
    assert jnp.allclose(out, ref, rtol=5e-2, atol=5e-2), "mismatch vs reference"
    print("KERNEL_OK")
</pallas_src>

<mosaic_0001>
module attributes {stable_mosaic.version = 11 : i64} {
  func.func @_gcn_fused_kernel(%arg0: i32, %arg1: i32, %arg2: memref<64x128xbf16, #tpu.memory_space<vmem>>, %arg3: memref<128x32xf32, #tpu.memory_space<vmem>>, %arg4: memref<128x1xf32, #tpu.memory_space<vmem>>, %arg5: memref<32x128xbf16, #tpu.memory_space<vmem>>, %arg6: memref<64x1xf32, #tpu.memory_space<vmem>>, %arg7: memref<1x128xf32, #tpu.memory_space<vmem>>, %arg8: memref<64x128xf32, #tpu.memory_space<vmem>>, %arg9: memref<64x128xf32, #tpu.memory_space<vmem>>) attributes {dimension_semantics = [#tpu.dimension_semantics<parallel>, #tpu.dimension_semantics<arbitrary>], iteration_bounds = array<i64: 2, 1>, scalar_prefetch = 0 : i64, scratch_operands = 1 : i64, tpu.core_type = #tpu.core_type<tc>, window_params = [{transform_indices = @transform_0, window_bounds = array<i64: 64, 128>}, {transform_indices = @transform_1, window_bounds = array<i64: 128, 32>}, {transform_indices = @transform_2, window_bounds = array<i64: 128, 1>}, {pipeline_mode = #tpu.pipeline_mode<synchronous>, transform_indices = @transform_3, window_bounds = array<i64: 32, 128>}, {transform_indices = @transform_4, window_bounds = array<i64: 64, 1>}, {pipeline_mode = #tpu.pipeline_mode<synchronous>, transform_indices = @transform_5, window_bounds = array<i64: 1, 128>}, {transform_indices = @transform_6, window_bounds = array<i64: 64, 128>}]} {
    %c0_i32 = arith.constant 0 : i32
    %0 = arith.cmpi eq, %arg1, %c0_i32 : i32
    %1 = arith.extui %0 : i1 to i32
    %c0_i32_0 = arith.constant 0 : i32
    %2 = arith.cmpi ne, %1, %c0_i32_0 : i32
    scf.if %2 {
      %cst_15 = arith.constant 0.000000e+00 : f32
      %19 = vector.broadcast %cst_15 : f32 to vector<64x128xf32>
      %c0_16 = arith.constant 0 : index
      %c0_17 = arith.constant 0 : index
      %20 = vector.load %arg9[%c0_16, %c0_17] : memref<64x128xf32, #tpu.memory_space<vmem>>, vector<64x128xf32>
      tpu.vector_store %arg9[%c0_16, %c0_17], %19 {strides = array<i32>} : memref<64x128xf32, #tpu.memory_space<vmem>>, vector<64x128xf32>,
    } else {
    }
    %c0 = arith.constant 0 : index
    %c0_1 = arith.constant 0 : index
    %3 = vector.load %arg3[%c0, %c0_1] : memref<128x32xf32, #tpu.memory_space<vmem>>, vector<128x32xf32>
    %c0_2 = arith.constant 0 : index
    %c0_3 = arith.constant 0 : index
    %4 = vector.load %arg4[%c0_2, %c0_3] : memref<128x1xf32, #tpu.memory_space<vmem>>, vector<128x1xf32>
    %5 = vector.broadcast %4 : vector<128x1xf32> to vector<128x32xf32>
    %6 = arith.mulf %3, %5 : vector<128x32xf32>
    %7 = arith.truncf %6 : vector<128x32xf32> to vector<128x32xbf16>
    %c0_4 = arith.constant 0 : index
    %c0_5 = arith.constant 0 : index
    %8 = vector.load %arg5[%c0_4, %c0_5] : memref<32x128xbf16, #tpu.memory_space<vmem>>, vector<32x128xbf16>
    %cst = arith.constant dense<0.000000e+00> : vector<128x128xf32>
    %9 = tpu.matmul %7, %8, %cst {dimension_numbers = #tpu.dot_dimension_numbers<[1], [0], [0], [1], [0, 0, 1, 1], [], []>} : vector<128x32xbf16>, vector<32x128xbf16>, vector<128x128xf32> -> vector<128x128xf32>
    %c0_6 = arith.constant 0 : index
    %c0_7 = arith.constant 0 : index
    %10 = vector.load %arg9[%c0_6, %c0_7] : memref<64x128xf32, #tpu.memory_space<vmem>>, vector<64x128xf32>
    %c0_8 = arith.constant 0 : index
    %c0_9 = arith.constant 0 : index
    %11 = vector.load %arg2[%c0_8, %c0_9] : memref<64x128xbf16, #tpu.memory_space<vmem>>, vector<64x128xbf16>
    %12 = arith.truncf %9 : vector<128x128xf32> to vector<128x128xbf16>
    %cst_10 = arith.constant dense<0.000000e+00> : vector<64x128xf32>
    %13 = tpu.matmul %11, %12, %cst_10 {dimension_numbers = #tpu.dot_dimension_numbers<[1], [0], [0], [1], [0, 0, 1, 1], [], []>} : vector<64x128xbf16>, vector<128x128xbf16>, vector<64x128xf32> -> vector<64x128xf32>
    %14 = arith.addf %10, %13 : vector<64x128xf32>
    %c0_11 = arith.constant 0 : index
    %c0_12 = arith.constant 0 : index
    %15 = vector.load %arg9[%c0_11, %c0_12] : memref<64x128xf32, #tpu.memory_space<vmem>>, vector<64x128xf32>
    tpu.vector_store %arg9[%c0_11, %c0_12], %14 {strides = array<i32>} : memref<64x128xf32, #tpu.memory_space<vmem>>, vector<64x128xf32>,
    %c0_i32_13 = arith.constant 0 : i32
    %16 = arith.cmpi eq, %arg1, %c0_i32_13 : i32
    %17 = arith.extui %16 : i1 to i32
    %c0_i32_14 = arith.constant 0 : i32
    %18 = arith.cmpi ne, %17, %c0_i32_14 : i32
    scf.if %18 {
      %c0_15 = arith.constant 0 : index
      %c0_16 = arith.constant 0 : index
      %19 = vector.load %arg9[%c0_15, %c0_16] : memref<64x128xf32, #tpu.memory_space<vmem>>, vector<64x128xf32>
      %c0_17 = arith.constant 0 : index
      %c0_18 = arith.constant 0 : index
      %20 = vector.load %arg6[%c0_17, %c0_18] : memref<64x1xf32, #tpu.memory_space<vmem>>, vector<64x1xf32>
      %21 = vector.broadcast %20 : vector<64x1xf32> to vector<64x128xf32>
      %22 = arith.mulf %19, %21 : vector<64x128xf32>
      %c0_19 = arith.constant 0 : index
      %c0_20 = arith.constant 0 : index
      %23 = vector.load %arg7[%c0_19, %c0_20] : memref<1x128xf32, #tpu.memory_space<vmem>>, vector<1x128xf32>
      %24 = vector.broadcast %23 : vector<1x128xf32> to vector<64x128xf32>
      %25 = arith.addf %22, %24 : vector<64x128xf32>
      %c0_21 = arith.constant 0 : index
      %c0_22 = arith.constant 0 : index
      %26 = vector.load %arg8[%c0_21, %c0_22] : memref<64x128xf32, #tpu.memory_space<vmem>>, vector<64x128xf32>
      tpu.vector_store %arg8[%c0_21, %c0_22], %25 {strides = array<i32>} : memref<64x128xf32, #tpu.memory_space<vmem>>, vector<64x128xf32>,
    } else {
    }
    return
  }
  func.func @transform_0(%arg0: i32, %arg1: i32) -> (i32, i32) {
    %c0_i32 = arith.constant 0 : i32
    return %arg0, %arg1 : i32, i32
  }
  func.func @transform_1(%arg0: i32, %arg1: i32) -> (i32, i32) {
    %c0_i32 = arith.constant 0 : i32
    %c0_i32_0 = arith.constant 0 : i32
    return %arg1, %c0_i32 : i32, i32
  }
  func.func @transform_2(%arg0: i32, %arg1: i32) -> (i32, i32) {
    %c0_i32 = arith.constant 0 : i32
    %c0_i32_0 = arith.constant 0 : i32
    return %arg1, %c0_i32 : i32, i32
  }
  func.func @transform_3(%arg0: i32, %arg1: i32) -> (i32, i32) {
    %c0_i32 = arith.constant 0 : i32
    %c0_i32_0 = arith.constant 0 : i32
    %c0_i32_1 = arith.constant 0 : i32
    return %c0_i32, %c0_i32_0 : i32, i32
  }
  func.func @transform_4(%arg0: i32, %arg1: i32) -> (i32, i32) {
    %c0_i32 = arith.constant 0 : i32
    %c0_i32_0 = arith.constant 0 : i32
    return %arg0, %c0_i32 : i32, i32
  }
  func.func @transform_5(%arg0: i32, %arg1: i32) -> (i32, i32) {
    %c0_i32 = arith.constant 0 : i32
    %c0_i32_0 = arith.constant 0 : i32
    %c0_i32_1 = arith.constant 0 : i32
    return %c0_i32, %c0_i32_0 : i32, i32
  }
  func.func @transform_6(%arg0: i32, %arg1: i32) -> (i32, i32) {
    %c0_i32 = arith.constant 0 : i32
    %c0_i32_0 = arith.constant 0 : i32
    return %arg0, %c0_i32 : i32, i32
  }
}

</mosaic_0001>

<llo_original>
// kernel: tpu_custom_call.1
$region0: #{tpu_custom_call.1}
  #allocation0 [shape = 'u32[]', space=smem, size = 0x4, offset = 0x4, fixed_abs, tag = 'smem constant byte address 0x4 - core index']
  #allocation1 [shape = 'u32[144,128]{1,0:T(1,128)}', space=vmem, size = 0x12000, scoped, tag = 'internal scratch']
  #allocation2 [shape = 'f32[64,128]{1,0:T(8,128)}', space=vmem, size = 0x8000, scoped, tag = 'scratch operand']
  %s0 = inlined_call_operand.vmem [shape: bf16[128,128], index: 0, kind: input, shape index: {}]
  %s1 = inlined_call_operand.vmem [shape: f32[128,32], index: 1, kind: input, shape index: {}]
  %s2 = inlined_call_operand.vmem [shape: f32[128,1], index: 2, kind: input, shape index: {}]
  %s3 = inlined_call_operand.vmem [shape: bf16[32,128], index: 3, kind: input, shape index: {}]
  %s4 = inlined_call_operand.vmem [shape: f32[128,1], index: 4, kind: input, shape index: {}]
  %s5 = inlined_call_operand.vmem [shape: f32[1,128], index: 5, kind: input, shape index: {}]
  %s6 = inlined_call_operand.hbm [shape: f32[128,128], index: 6, kind: output, shape index: {}]
  %s7 = sld [smem:[#allocation0]]
  $region65: #{tpu_custom_call.1} parent=0
    _
  %s9 = ssub.s32 1, %s7
  %s10 = scalar_select 0, %s9, %s7
  $region1: #{tpu_custom_call.1} parent=0
    #allocation3 [shape = 'u8[65536]{0}', space=vmem, size = 0x10000, scoped, tag = 'output window, operand 0']
    #allocation4 [shape = 's32[2]{0}', space=sflag, size = 0x8, scoped, tag = 'scoped memory for tpu_custom_call.1']
    %11 = vsyncpa [#allocation4], 0
    %s12 = scalar_lea.sflag [#allocation4], 1
    %13 = vsyncpa %s12, 0
    loop: start=0, step=1, limit=4
    $region2: #{tpu_custom_call.1} parent=1 // loop_pre_header
      _
    $region3: #{tpu_custom_call.1} parent=1 // loop_header
      %s15 = sphi 0, %s19
      %p16 = scmp.ge.s32.totalorder %s15, 4
      %s22 = sphi 0, %s34
      %s23 = sphi 0, %s30
      %s24 = sphi 0, %s22
      %s25 = sphi 0, %s23
      %s26 = sphi 0, %s24
      %s27 = sphi 0, %s25
      %s39 = sphi 0, %s41
      %s42 = sphi 0, %s39
      %s43 = sphi 0, %s42
      %s59 = sphi 0, %s43
      %s65 = sphi 0, %s67
      %s68 = sphi 0, %s65
      %s69 = sphi 0, %s68
      %s85 = sphi 0, %s69
      %s91 = sphi 0, %s93
      %s94 = sphi 0, %s91
      %s95 = sphi 0, %s94
      %s111 = sphi 0, %s95
      %s115 = sphi 0, %s115
      %s117 = sphi 0, %s115
      %s118 = sphi 0, %s117
      %s132 = sphi 0, %s118
      %s138 = sphi 0, %s140
      %s141 = sphi 0, %s138
      %s142 = sphi 0, %s141
      %s158 = sphi 0, %s142
      %s162 = sphi 0, %s162
      %s164 = sphi 0, %s162
      %s165 = sphi 0, %s164
      %s179 = sphi 0, %s165
      %s185 = sphi 0, %s187
      %s188 = sphi 0, %s185
      %s189 = sphi 0, %s188
      %s205 = sphi 0, %s189
    $region4: #{tpu_custom_call.1} parent=1 // loop_header_branch
      %18 = sbr.rel (%p16) target = $region8
    $region5: #{tpu_custom_call.1} parent=1 // loop_body
      %s20 = ssub.s32 %s15, 1
      %s21 = ssub.s32 %s15, 2
      %s28 = sadd.s32 1, %s23
      %p29 = scmp.ge.s32.totalorder %s28, 1
      %s30 = scalar_select %p29, 0, %s28
      %s31 = sadd.s32 1, %s22
      %s32 = scalar_select %p29, %s31, %s22
      %p33 = scmp.ge.s32.totalorder %s32, 2
      %s34 = scalar_select %p33, 0, %s32
      %s35 = ssub.s32 %s22, %s34
      %s36 = ssub.s32 %s23, %s30
      %s37 = sor.u32 %s35, %s36
      %p38 = scmp.eq.s32.totalorder %s37, 0
      %s40 = sadd.s32 %s39, 1
      %s41 = scalar_select %p38, %s39, %s40
      %p44 = pneg %p38
      %p45 = scmp.eq.s32.totalorder %s15, 1
      %p46 = por %p44, %p45
      %p47 = scmp.ne.s32.totalorder %s39, %s42
      %p48 = scmp.eq.s32.totalorder %s15, 0
      %p49 = por %p47, %p48
      %p50 = scmp.ne.s32.totalorder %s39, %s42
      %p51 = scmp.eq.s32.totalorder %s20, 1
      %p52 = por %p50, %p51
      %p53 = scmp.ne.s32.totalorder %s42, %s43
      %p54 = scmp.eq.s32.totalorder %s20, 0
      %p55 = por %p53, %p54
      %p56 = scmp.ne.s32.totalorder %s42, %s43
      %p57 = scmp.eq.s32.totalorder %s21, 1
      %p58 = por %p56, %p57
      %p60 = scmp.ne.s32.totalorder %s43, %s59
      %p61 = scmp.eq.s32.totalorder %s21, 0
      %p62 = por %p60, %p61
      %s63 = ssub.s32 %s23, %s30
      %p64 = scmp.eq.s32.totalorder %s63, 0
      %s66 = sadd.s32 %s65, 1
      %s67 = scalar_select %p64, %s65, %s66
      %p70 = pneg %p64
      %p71 = scmp.eq.s32.totalorder %s15, 1
      %p72 = por %p70, %p71
      %p73 = scmp.ne.s32.totalorder %s65, %s68
      %p74 = scmp.eq.s32.totalorder %s15, 0
      %p75 = por %p73, %p74
      %p76 = scmp.ne.s32.totalorder %s65, %s68
      %p77 = scmp.eq.s32.totalorder %s20, 1
      %p78 = por %p76, %p77
      %p79 = scmp.ne.s32.totalorder %s68, %s69
      %p80 = scmp.eq.s32.totalorder %s20, 0
      %p81 = por %p79, %p80
      %p82 = scmp.ne.s32.totalorder %s68, %s69
      %p83 = scmp.eq.s32.totalorder %s21, 1
      %p84 = por %p82, %p83
      %p86 = scmp.ne.s32.totalorder %s69, %s85
      %p87 = scmp.eq.s32.totalorder %s21, 0
      %p88 = por %p86, %p87
      %s89 = ssub.s32 %s23, %s30
      %p90 = scmp.eq.s32.totalorder %s89, 0
      %s92 = sadd.s32 %s91, 1
      %s93 = scalar_select %p90, %s91, %s92
      %p96 = pneg %p90
      %p97 = scmp.eq.s32.totalorder %s15, 1
      %p98 = por %p96, %p97
      %p99 = scmp.ne.s32.totalorder %s91, %s94
      %p100 = scmp.eq.s32.totalorder %s15, 0
      %p101 = por %p99, %p100
      %p102 = scmp.ne.s32.totalorder %s91, %s94
      %p103 = scmp.eq.s32.totalorder %s20, 1
      %p104 = por %p102, %p103
      %p105 = scmp.ne.s32.totalorder %s94, %s95
      %p106 = scmp.eq.s32.totalorder %s20, 0
      %p107 = por %p105, %p106
      %p108 = scmp.ne.s32.totalorder %s94, %s95
      %p109 = scmp.eq.s32.totalorder %s21, 1
      %p110 = por %p108, %p109
      %p112 = scmp.ne.s32.totalorder %s95, %s111
      %p113 = scmp.eq.s32.totalorder %s21, 0
      %p114 = por %p112, %p113
      %s116 = sadd.s32 %s115, 1
      %p119 = scmp.eq.s32.totalorder %s15, 1
      %p120 = scmp.ne.s32.totalorder %s115, %s117
      %p121 = scmp.eq.s32.totalorder %s15, 0
      %p122 = por %p120, %p121
      %p123 = scmp.ne.s32.totalorder %s115, %s117
      %p124 = scmp.eq.s32.totalorder %s20, 1
      %p125 = por %p123, %p124
      %p126 = scmp.ne.s32.totalorder %s117, %s118
      %p127 = scmp.eq.s32.totalorder %s20, 0
      %p128 = por %p126, %p127
      %p129 = scmp.ne.s32.totalorder %s117, %s118
      %p130 = scmp.eq.s32.totalorder %s21, 1
      %p131 = por %p129, %p130
      %p133 = scmp.ne.s32.totalorder %s118, %s132
      %p134 = scmp.eq.s32.totalorder %s21, 0
      %p135 = por %p133, %p134
      %s136 = ssub.s32 %s22, %s34
      %p137 = scmp.eq.s32.totalorder %s136, 0
      %s139 = sadd.s32 %s138, 1
      %s140 = scalar_select %p137, %s138, %s139
      %p143 = pneg %p137
      %p144 = scmp.eq.s32.totalorder %s15, 1
      %p145 = por %p143, %p144
      %p146 = scmp.ne.s32.totalorder %s138, %s141
      %p147 = scmp.eq.s32.totalorder %s15, 0
      %p148 = por %p146, %p147
      %p149 = scmp.ne.s32.totalorder %s138, %s141
      %p150 = scmp.eq.s32.totalorder %s20, 1
      %p151 = por %p149, %p150
      %p152 = scmp.ne.s32.totalorder %s141, %s142
      %p153 = scmp.eq.s32.totalorder %s20, 0
      %p154 = por %p152, %p153
      %p155 = scmp.ne.s32.totalorder %s141, %s142
      %p156 = scmp.eq.s32.totalorder %s21, 1
      %p157 = por %p155, %p156
      %p159 = scmp.ne.s32.totalorder %s142, %s158
      %p160 = scmp.eq.s32.totalorder %s21, 0
      %p161 = por %p159, %p160
      %s163 = sadd.s32 %s162, 1
      %p166 = scmp.eq.s32.totalorder %s15, 1
      %p167 = scmp.ne.s32.totalorder %s162, %s164
      %p168 = scmp.eq.s32.totalorder %s15, 0
      %p169 = por %p167, %p168
      %p170 = scmp.ne.s32.totalorder %s162, %s164
      %p171 = scmp.eq.s32.totalorder %s20, 1
      %p172 = por %p170, %p171
      %p173 = scmp.ne.s32.totalorder %s164, %s165
      %p174 = scmp.eq.s32.totalorder %s20, 0
      %p175 = por %p173, %p174
      %p176 = scmp.ne.s32.totalorder %s164, %s165
      %p177 = scmp.eq.s32.totalorder %s21, 1
      %p178 = por %p176, %p177
      %p180 = scmp.ne.s32.totalorder %s165, %s179
      %p181 = scmp.eq.s32.totalorder %s21, 0
      %p182 = por %p180, %p181
      %s183 = ssub.s32 %s22, %s34
      %p184 = scmp.eq.s32.totalorder %s183, 0
      %s186 = sadd.s32 %s185, 1
      %s187 = scalar_select %p184, %s185, %s186
      %p190 = pneg %p184
      %p191 = scmp.eq.s32.totalorder %s15, 1
      %p192 = por %p190, %p191
      %p193 = scmp.ne.s32.totalorder %s185, %s188
      %p194 = scmp.eq.s32.totalorder %s15, 0
      %p195 = por %p193, %p194
      %p196 = scmp.ne.s32.totalorder %s185, %s188
      %p197 = scmp.eq.s32.totalorder %s20, 1
      %p198 = por %p196, %p197
      %p199 = scmp.ne.s32.totalorder %s188, %s189
      %p200 = scmp.eq.s32.totalorder %s20, 0
      %p201 = por %p199, %p200
      %p202 = scmp.ne.s32.totalorder %s188, %s189
      %p203 = scmp.eq.s32.totalorder %s21, 1
      %p204 = por %p202, %p203
      %p206 = scmp.ne.s32.totalorder %s189, %s205
      %p207 = scmp.eq.s32.totalorder %s21, 0
      %p208 = por %p206, %p207
      %p209 = scmp.le.s32.totalorder 1, %s15
      %p210 = scmp.lt.s32.totalorder %s15, 3
      %p211 = pnand %p209, %p210
      %p212 = pneg %p211
      // Predicated region
      $region9: #{tpu_custom_call.1} parent=5 // pred_check
        _
      $region10: #{tpu_custom_call.1} parent=5 // pred_check_branch
        %214 = sbr.rel (%p211) target = $region12
      $region11: #{tpu_custom_call.1} parent=5 // pred_region
        %s215 = ssub.s32 %s15, 1
        // Predicated region
        $region13: #{tpu_custom_call.1} parent=11 // pred_check
          %p216 = pneg %p81
        $region14: #{tpu_custom_call.1} parent=11 // pred_check_branch
          %218 = sbr.rel (%p216) target = $region16
        $region15: #{tpu_custom_call.1} parent=11 // pred_region
          %s219 = smul.u32 16, %s25
          %p220 = scmp.lt.s32.totalorder %s219, 15
          %s221 = scalar_select %p220, %s219, 15
          %s222 = smul.addr %s221, 8
          %s223 = scalar_lea.vmem %s1, %s222
          %s224 = smul.u32 16, %s25
        $region16: #{tpu_custom_call.1} parent=11 // pred_fallthru
          _
        // Predicated region
        $region17: #{tpu_custom_call.1} parent=11 // pred_check
          %p225 = pneg %p107
        $region18: #{tpu_custom_call.1} parent=11 // pred_check_branch
          %227 = sbr.rel (%p225) target = $region20
        $region19: #{tpu_custom_call.1} parent=11 // pred_region
          %s228 = smul.u32 16, %s25
          %p229 = scmp.lt.s32.totalorder %s228, 15
          %s230 = scalar_select %p229, %s228, 15
          %s231 = smul.addr %s230, 8
          %s232 = scalar_lea.vmem %s2, %s231
          %s233 = smul.u32 16, %s25
        $region20: #{tpu_custom_call.1} parent=11 // pred_fallthru
          _
        // Predicated region
        $region21: #{tpu_custom_call.1} parent=11 // pred_check
          %p234 = pneg %p128
        $region22: #{tpu_custom_call.1} parent=11 // pred_check_branch
          %236 = sbr.rel (%p234) target = $region24
        $region23: #{tpu_custom_call.1} parent=11 // pred_region
          _
        $region24: #{tpu_custom_call.1} parent=11 // pred_fallthru
          _
        // Predicated region
        $region25: #{tpu_custom_call.1} parent=11 // pred_check
          %p237 = pneg %p175
        $region26: #{tpu_custom_call.1} parent=11 // pred_check_branch
          %239 = sbr.rel (%p237) target = $region28
        $region27: #{tpu_custom_call.1} parent=11 // pred_region
          _
        $region28: #{tpu_custom_call.1} parent=11 // pred_fallthru
          _
      $region12: #{tpu_custom_call.1} parent=5 // pred_fallthru
        _
      %p240 = scmp.lt.s32.totalorder %s15, 2
      // Predicated region
      $region29: #{tpu_custom_call.1} parent=5 // pred_check
        %p241 = pneg %p240
      $region30: #{tpu_custom_call.1} parent=5 // pred_check_branch
        %243 = sbr.rel (%p241) target = $region32
      $region31: #{tpu_custom_call.1} parent=5 // pred_region
        // Predicated region
        $region33: #{tpu_custom_call.1} parent=31 // pred_check
          %p244 = pneg %p49
        $region34: #{tpu_custom_call.1} parent=31 // pred_check_branch
          %246 = sbr.rel (%p244) target = $region36
        $region35: #{tpu_custom_call.1} parent=31 // pred_region
          %s247 = smul.u32 8, %s22
          %p248 = scmp.lt.s32.totalorder %s247, 15
          %s249 = scalar_select %p248, %s247, 15
          %p250 = scmp.lt.s32.totalorder %s23, 0
          %s251 = scalar_select %p250, %s23, 0
          %s252 = sadd.s32 %s251, %s249
          %s253 = smul.addr %s252, 4
          %s254 = scalar_lea.vmem %s0, %s253
          %s255 = smul.u32 8, %s22
        $region36: #{tpu_custom_call.1} parent=31 // pred_fallthru
          _
        // Predicated region
        $region37: #{tpu_custom_call.1} parent=31 // pred_check
          %p256 = pneg %p148
        $region38: #{tpu_custom_call.1} parent=31 // pred_check_branch
          %258 = sbr.rel (%p256) target = $region40
        $region39: #{tpu_custom_call.1} parent=31 // pred_region
          %s259 = smul.u32 8, %s22
          %p260 = scmp.lt.s32.totalorder %s259, 15
          %s261 = scalar_select %p260, %s259, 15
          %s262 = smul.addr %s261, 8
          %s263 = scalar_lea.vmem %s4, %s262
          %s264 = smul.u32 8, %s22
        $region40: #{tpu_custom_call.1} parent=31 // pred_fallthru
          _
      $region32: #{tpu_custom_call.1} parent=5 // pred_fallthru
        _
      %p265 = scmp.le.s32.totalorder 1, %s15
      %p266 = scmp.lt.s32.totalorder %s15, 3
      %p267 = pnand %p265, %p266
      %p268 = pneg %p267
      // Predicated region
      $region41: #{tpu_custom_call.1} parent=5 // pred_check
        _
      $region42: #{tpu_custom_call.1} parent=5 // pred_check_branch
        %270 = sbr.rel (%p267) target = $region44
      $region43: #{tpu_custom_call.1} parent=5 // pred_region
        %s271 = ssub.s32 %s15, 1
        %s272 = smul.u32 8, %s24
        %p273 = scmp.lt.s32.totalorder %s272, 15
        %s274 = scalar_select %p273, %s272, 15
        %p275 = scmp.lt.s32.totalorder %s25, 0
        %s276 = scalar_select %p275, %s25, 0
        %s277 = sadd.s32 %s276, %s274
        %s278 = smul.addr %s277, 4
        %s279 = scalar_lea.vmem %s0, %s278
        %p280 = pneg %p55
        %p281 = pneg %p52
        %s282 = smul.u32 16, %s25
        %p283 = scmp.lt.s32.totalorder %s282, 15
        %s284 = scalar_select %p283, %s282, 15
        %s285 = smul.addr %s284, 8
        %s286 = scalar_lea.vmem %s1, %s285
        %p287 = pneg %p81
        %p288 = pneg %p78
        %s289 = smul.u32 16, %s25
        %p290 = scmp.lt.s32.totalorder %s289, 15
        %s291 = scalar_select %p290, %s289, 15
        %s292 = smul.addr %s291, 8
        %s293 = scalar_lea.vmem %s2, %s292
        %p294 = pneg %p107
        %p295 = pneg %p104
        %p296 = pneg %p128
        %p297 = pneg %p125
        %s298 = smul.u32 8, %s24
        %p299 = scmp.lt.s32.totalorder %s298, 15
        %s300 = scalar_select %p299, %s298, 15
        %s301 = smul.addr %s300, 8
        %s302 = scalar_lea.vmem %s4, %s301
        %p303 = pneg %p154
        %p304 = pneg %p151
        %p305 = pneg %p175
        %p306 = pneg %p172
        %p307 = pneg %p201
        %p308 = pneg %p198
        %s309 = sand.u32 %s188, 1
        %s310 = scalar_lea.sflag [#allocation4], %s309
        %s311 = sand.u32 %s188, 1
        %s312 = smul.addr %s311, 64
        %s313 = scalar_lea.vmem [#allocation3], %s312
        %s314 = smul.u32 8, %s24
        %p315 = scmp.lt.s32.totalorder %s314, 15
        %s316 = scalar_select %p315, %s314, 15
        %p317 = scmp.lt.s32.totalorder %s25, 0
        %s318 = scalar_select %p317, %s25, 0
        %s319 = sadd.s32 %s318, %s316
        %s320 = smul.addr %s319, 4
        %s321 = scalar_lea.vmem %s0, %s320
        %s322 = smul.u32 8, %s24
        %s323 = smul.u32 16, %s25
        %p324 = scmp.lt.s32.totalorder %s323, 15
        %s325 = scalar_select %p324, %s323, 15
        %s326 = smul.addr %s325, 8
        %s327 = scalar_lea.vmem %s1, %s326
        %s328 = smul.u32 16, %s25
        %s329 = smul.u32 16, %s25
        %p330 = scmp.lt.s32.totalorder %s329, 15
        %s331 = scalar_select %p330, %s329, 15
        %s332 = smul.addr %s331, 8
        %s333 = scalar_lea.vmem %s2, %s332
        %s334 = smul.u32 16, %s25
        %s335 = smul.u32 8, %s24
        %p336 = scmp.lt.s32.totalorder %s335, 15
        %s337 = scalar_select %p336, %s335, 15
        %s338 = smul.addr %s337, 8
        %s339 = scalar_lea.vmem %s4, %s338
        %s340 = smul.u32 8, %s24
        %s341 = smul.u32 8, %s24
        %p343 = scmp.eq.s32.totalorder %s25, 0
        // Predicated region
        $region45: #{tpu_custom_call.1} parent=43 // pred_check
          %p344 = pneg %p343
        $region46: #{tpu_custom_call.1} parent=43 // pred_check_branch
          %346 = sbr.rel (%p344) target = $region48
        $region47: #{tpu_custom_call.1} parent=43 // pred_region
          %347 = vst [vmem:[#allocation2] sm:$0xff] 0.0
          %348 = vst [vmem:[#allocation2 + $0x8] sm:$0xff] 0.0
          %349 = vst [vmem:[#allocation2 + $0x10] sm:$0xff] 0.0
          %350 = vst [vmem:[#allocation2 + $0x18] sm:$0xff] 0.0
          %351 = vst [vmem:[#allocation2 + $0x20] sm:$0xff] 0.0
          %352 = vst [vmem:[#allocation2 + $0x28] sm:$0xff] 0.0
          %353 = vst [vmem:[#allocation2 + $0x30] sm:$0xff] 0.0
          %354 = vst [vmem:[#allocation2 + $0x38] sm:$0xff] 0.0
        $region48: #{tpu_custom_call.1} parent=43 // pred_fallthru
          _
        %v355 = vld [vmem:[%s327] sm:$0xff]
        %v356 = vld [vmem:[%s327 + $0x8] sm:$0xff]
        %v357 = vld [vmem:[%s327 + $0x10] sm:$0xff]
        %v358 = vld [vmem:[%s327 + $0x18] sm:$0xff]
        %v359 = vld [vmem:[%s327 + $0x20] sm:$0xff]
        %v360 = vld [vmem:[%s327 + $0x28] sm:$0xff]
        %v361 = vld [vmem:[%s327 + $0x30] sm:$0xff]
        %v362 = vld [vmem:[%s327 + $0x38] sm:$0xff]
        %v363 = vld [vmem:[%s327 + $0x40] sm:$0xff]
        %v364 = vld [vmem:[%s327 + $0x48] sm:$0xff]
        %v365 = vld [vmem:[%s327 + $0x50] sm:$0xff]
        %v366 = vld [vmem:[%s327 + $0x58] sm:$0xff]
        %v367 = vld [vmem:[%s327 + $0x60] sm:$0xff]
        %v368 = vld [vmem:[%s327 + $0x68] sm:$0xff]
        %v369 = vld [vmem:[%s327 + $0x70] sm:$0xff]
        %v370 = vld [vmem:[%s327 + $0x78] sm:$0xff]
        %v371 = vld [vmem:[%s333] sm:$0xff]
        %v372 = vld [vmem:[%s333 + $0x8] sm:$0xff]
        %v373 = vld [vmem:[%s333 + $0x10] sm:$0xff]
        %v374 = vld [vmem:[%s333 + $0x18] sm:$0xff]
        %v375 = vld [vmem:[%s333 + $0x20] sm:$0xff]
        %v376 = vld [vmem:[%s333 + $0x28] sm:$0xff]
        %v377 = vld [vmem:[%s333 + $0x30] sm:$0xff]
        %v378 = vld [vmem:[%s333 + $0x38] sm:$0xff]
        %v379 = vld [vmem:[%s333 + $0x40] sm:$0xff]
        %v380 = vld [vmem:[%s333 + $0x48] sm:$0xff]
        %v381 = vld [vmem:[%s333 + $0x50] sm:$0xff]
        %v382 = vld [vmem:[%s333 + $0x58] sm:$0xff]
        %v383 = vld [vmem:[%s333 + $0x60] sm:$0xff]
        %v384 = vld [vmem:[%s333 + $0x68] sm:$0xff]
        %v385 = vld [vmem:[%s333 + $0x70] sm:$0xff]
        %v386 = vld [vmem:[%s333 + $0x78] sm:$0xff]
        %388 = vset.pattern.permute.xlu0 0
        %389 = vperm.xlu0 %388, %v371
        %v390 = vpop.permute.xlu0 %389
        %393 = vset.pattern.permute.xlu0 0
        %394 = vperm.xlu0 %393, %v372
        %v395 = vpop.permute.xlu0 %394
        %398 = vset.pattern.permute.xlu0 0
        %399 = vperm.xlu0 %398, %v373
        %v400 = vpop.permute.xlu0 %399
        %403 = vset.pattern.permute.xlu0 0
        %404 = vperm.xlu0 %403, %v374
        %v405 = vpop.permute.xlu0 %404
        %408 = vset.pattern.permute.xlu0 0
        %409 = vperm.xlu0 %408, %v375
        %v410 = vpop.permute.xlu0 %409
        %413 = vset.pattern.permute.xlu0 0
        %414 = vperm.xlu0 %413, %v376
        %v415 = vpop.permute.xlu0 %414
        %418 = vset.pattern.permute.xlu0 0
        %419 = vperm.xlu0 %418, %v377
        %v420 = vpop.permute.xlu0 %419
        %423 = vset.pattern.permute.xlu0 0
        %424 = vperm.xlu0 %423, %v378
        %v425 = vpop.permute.xlu0 %424
        %428 = vset.pattern.permute.xlu0 0
        %429 = vperm.xlu0 %428, %v379
        %v430 = vpop.permute.xlu0 %429
        %433 = vset.pattern.permute.xlu0 0
        %434 = vperm.xlu0 %433, %v380
        %v435 = vpop.permute.xlu0 %434
        %438 = vset.pattern.permute.xlu0 0
        %439 = vperm.xlu0 %438, %v381
        %v440 = vpop.permute.xlu0 %439
        %443 = vset.pattern.permute.xlu0 0
        %444 = vperm.xlu0 %443, %v382
        %v445 = vpop.permute.xlu0 %444
        %448 = vset.pattern.permute.xlu0 0
        %449 = vperm.xlu0 %448, %v383
        %v450 = vpop.permute.xlu0 %449
        %453 = vset.pattern.permute.xlu0 0
        %454 = vperm.xlu0 %453, %v384
        %v455 = vpop.permute.xlu0 %454
        %458 = vset.pattern.permute.xlu0 0
        %459 = vperm.xlu0 %458, %v385
        %v460 = vpop.permute.xlu0 %459
        %463 = vset.pattern.permute.xlu0 0
        %464 = vperm.xlu0 %463, %v386
        %v465 = vpop.permute.xlu0 %464
        %v467 = vmul.f32 %v355, %v390
        %v468 = vmul.f32 %v356, %v395
        %v469 = vmul.f32 %v357, %v400
        %v470 = vmul.f32 %v358, %v405
        %v471 = vmul.f32 %v359, %v410
        %v472 = vmul.f32 %v360, %v415
        %v473 = vmul.f32 %v361, %v420
        %v474 = vmul.f32 %v362, %v425
        %v475 = vmul.f32 %v363, %v430
        %v476 = vmul.f32 %v364, %v435
        %v477 = vmul.f32 %v365, %v440
        %v478 = vmul.f32 %v366, %v445
        %v479 = vmul.f32 %v367, %v450
        %v480 = vmul.f32 %v368, %v455
        %v481 = vmul.f32 %v369, %v460
        %v482 = vmul.f32 %v370, %v465
        %v483 = vpack.c.bf16 %v468, %v467
        %v484 = vpack.c.bf16 %v470, %v469
        %v485 = vpack.c.bf16 %v472, %v471
        %v486 = vpack.c.bf16 %v474, %v473
        %v487 = vpack.c.bf16 %v476, %v475
        %v488 = vpack.c.bf16 %v478, %v477
        %v489 = vpack.c.bf16 %v480, %v479
        %v490 = vpack.c.bf16 %v482, %v481
        %v491 = vld [vmem:[%s3] sm:$0xf]
        %v492 = vld [vmem:[%s3 + $0x4] sm:$0xf]
        %v493 = vld [vmem:[%s3 + $0x8] sm:$0xf]
        %v494 = vld [vmem:[%s3 + $0xc] sm:$0xf]
        %v499 = vunpack.c.l.b16 %v491
        %v500 = vunpack.c.l.b16 %v492
        %v501 = vunpack.c.l.b16 %v493
        %v502 = vunpack.c.l.b16 %v494
        %v503 = vpack.c.b16 %v500, %v499
        %v504 = vpack.c.b16 %v502, %v501
        %vm507 = vcmask 261120
        %v509 = vsel %vm507, %v483, 0
        %v512 = vsel %vm507, %v484, 0
        %v515 = vsel %vm507, %v485, 0
        %v518 = vsel %vm507, %v486, 0
        %v521 = vsel %vm507, %v487, 0
        %v524 = vsel %vm507, %v488, 0
        %v527 = vsel %vm507, %v489, 0
        %v530 = vsel %vm507, %v490, 0
        %532 = vmatprep.subr.bf16.mxu0 0
        %533 = vmatpush1.bf16.msra.mxu0 %v503
        %534 = vmatprep.subr.bf16.mxu0 0
        %535 = vmatpush1.bf16.msra.mxu0 %v504
        %536 = vmatprep.subr.bf16.mxu0 0
        %537 = vmatpush1.bf16.msra.mxu0 0
        %538 = vmatprep.subr.bf16.mxu0 0
        %539 = vmatpush1.bf16.msra.mxu0 0
        %540 = vmatprep.subr.bf16.mxu0 0
        %541 = vmatpush1.bf16.msra.mxu0 0
        %542 = vmatprep.subr.bf16.mxu0 0
        %543 = vmatpush1.bf16.msra.mxu0 0
        %544 = vmatprep.subr.bf16.mxu0 0
        %545 = vmatpush1.bf16.msra.mxu0 0
        %546 = vmatprep.subr.bf16.mxu0 0
        %547 = vmatpush1.bf16.msra.mxu0 0
        %548 = vmatprep.subr.bf16.mxu0 0
        %549 = vmatpush1.bf16.msra.mxu0 0
        %550 = vmatprep.subr.bf16.mxu0 0
        %551 = vmatpush1.bf16.msra.mxu0 0
        %552 = vmatprep.subr.bf16.mxu0 0
        %553 = vmatpush1.bf16.msra.mxu0 0
        %554 = vmatprep.subr.bf16.mxu0 0
        %555 = vmatpush1.bf16.msra.mxu0 0
        %556 = vmatprep.subr.bf16.mxu0 0
        %557 = vmatpush1.bf16.msra.mxu0 0
        %558 = vmatprep.subr.bf16.mxu0 0
        %559 = vmatpush1.bf16.msra.mxu0 0
        %560 = vmatprep.subr.bf16.mxu0 0
        %561 = vmatpush1.bf16.msra.mxu0 0
        %562 = vmatprep.subr.bf16.mxu0 0
        %563 = vmatpush1.bf16.msra.mxu0 0
        %564 = vmatprep.mubr.bf16.mxu0 0
        %565 = vmatmul.mubr.bf16.gmra.mrb[0].mxu0 %v509
        %v566 = vpop.f32.mrb[0].mxu0
        %v567 = vadd.f32 0.0, %v566
        %v568 = vpop.f32.mrb[0].mxu0
        %v569 = vpop.f32.mrb[0].mxu0
        %v570 = vadd.f32 0.0, %v569
        %v571 = vpop.f32.mrb[0].mxu0
        %572 = vmatprep.mubr.bf16.mxu0 0
        %573 = vmatmul.mubr.bf16.gmra.mrb[0].mxu0 %v512
        %v574 = vpop.f32.mrb[0].mxu0
        %v575 = vadd.f32 0.0, %v574
        %v576 = vpop.f32.mrb[0].mxu0
        %v577 = vpop.f32.mrb[0].mxu0
        %v578 = vadd.f32 0.0, %v577
        %v579 = vpop.f32.mrb[0].mxu0
        %580 = vmatprep.mubr.bf16.mxu0 0
        %581 = vmatmul.mubr.bf16.gmra.mrb[0].mxu0 %v515
        %v582 = vpop.f32.mrb[0].mxu0
        %v583 = vadd.f32 0.0, %v582
        %v584 = vpop.f32.mrb[0].mxu0
        %v585 = vpop.f32.mrb[0].mxu0
        %v586 = vadd.f32 0.0, %v585
        %v587 = vpop.f32.mrb[0].mxu0
        %588 = vmatprep.mubr.bf16.mxu0 0
        %589 = vmatmul.mubr.bf16.gmra.mrb[0].mxu0 %v518
        %v590 = vpop.f32.mrb[0].mxu0
        %v591 = vadd.f32 0.0, %v590
        %v592 = vpop.f32.mrb[0].mxu0
        %v593 = vpop.f32.mrb[0].mxu0
        %v594 = vadd.f32 0.0, %v593
        %v595 = vpop.f32.mrb[0].mxu0
        %596 = vmatprep.mubr.bf16.mxu0 0
        %597 = vmatmul.mubr.bf16.gmra.mrb[0].mxu0 %v521
        %v598 = vpop.f32.mrb[0].mxu0
        %v599 = vadd.f32 0.0, %v598
        %v600 = vpop.f32.mrb[0].mxu0
        %v601 = vpop.f32.mrb[0].mxu0
        %v602 = vadd.f32 0.0, %v601
        %v603 = vpop.f32.mrb[0].mxu0
        %604 = vmatprep.mubr.bf16.mxu0 0
        %605 = vmatmul.mubr.bf16.gmra.mrb[0].mxu0 %v524
        %v606 = vpop.f32.mrb[0].mxu0
        %v607 = vadd.f32 0.0, %v606
        %v608 = vpop.f32.mrb[0].mxu0
        %v609 = vpop.f32.mrb[0].mxu0
        %v610 = vadd.f32 0.0, %v609
        %v611 = vpop.f32.mrb[0].mxu0
        %612 = vmatprep.mubr.bf16.mxu0 0
        %613 = vmatmul.mubr.bf16.gmra.mrb[0].mxu0 %v527
        %v614 = vpop.f32.mrb[0].mxu0
        %v615 = vadd.f32 0.0, %v614
        %v616 = vpop.f32.mrb[0].mxu0
        %v617 = vpop.f32.mrb[0].mxu0
        %v618 = vadd.f32 0.0, %v617
        %v619 = vpop.f32.mrb[0].mxu0
        %620 = vmatprep.mubr.bf16.mxu0 0
        %621 = vmatmul.mubr.bf16.gmra.mrb[0].mxu0 %v530
        %v622 = vpop.f32.mrb[0].mxu0
        %v623 = vadd.f32 0.0, %v622
        %v624 = vpop.f32.mrb[0].mxu0
        %v625 = vpop.f32.mrb[0].mxu0
        %v626 = vadd.f32 0.0, %v625
        %v627 = vpop.f32.mrb[0].mxu0
        %628 = vdwg.mxu0
        %v629 = vld [vmem:[#allocation2] sm:$0xff]
        %v630 = vld [vmem:[#allocation2 + $0x8] sm:$0xff]
        %v631 = vld [vmem:[#allocation2 + $0x10] sm:$0xff]
        %v632 = vld [vmem:[#allocation2 + $0x18] sm:$0xff]
        %v633 = vld [vmem:[#allocation2 + $0x20] sm:$0xff]
        %v634 = vld [vmem:[#allocation2 + $0x28] sm:$0xff]
        %v635 = vld [vmem:[#allocation2 + $0x30] sm:$0xff]
        %v636 = vld [vmem:[#allocation2 + $0x38] sm:$0xff]
        %v637 = vld [vmem:[%s321] sm:$0xf]
        %v638 = vld [vmem:[%s321 + $0x4] sm:$0xf]
        %v639 = vld [vmem:[%s321 + $0x8] sm:$0xf]
        %v640 = vld [vmem:[%s321 + $0xc] sm:$0xf]
        %v641 = vld [vmem:[%s321 + $0x10] sm:$0xf]
        %v642 = vld [vmem:[%s321 + $0x14] sm:$0xf]
        %v643 = vld [vmem:[%s321 + $0x18] sm:$0xf]
        %v644 = vld [vmem:[%s321 + $0x1c] sm:$0xf]
        %v645 = vpack.c.bf16 %v570, %v567
        %v646 = vpack.c.bf16 %v578, %v575
        %v647 = vpack.c.bf16 %v586, %v583
        %v648 = vpack.c.bf16 %v594, %v591
        %v649 = vpack.c.bf16 %v602, %v599
        %v650 = vpack.c.bf16 %v610, %v607
        %v651 = vpack.c.bf16 %v618, %v615
        %v652 = vpack.c.bf16 %v626, %v623
        %v661 = vunpack.c.l.b16 %v637
        %v662 = vunpack.c.l.b16 %v638
        %v663 = vunpack.c.l.b16 %v639
        %v664 = vunpack.c.l.b16 %v640
        %v665 = vunpack.c.l.b16 %v641
        %v666 = vunpack.c.l.b16 %v642
        %v667 = vunpack.c.l.b16 %v643
        %v668 = vunpack.c.l.b16 %v644
        %v669 = vpack.c.b16 %v662, %v661
        %v670 = vpack.c.b16 %v664, %v663
        %v671 = vpack.c.b16 %v666, %v665
        %v672 = vpack.c.b16 %v668, %v667
        %677 = vmatprep.subr.bf16.mxu0 0
        %678 = vmatpush1.bf16.msra.mxu0 %v645
        %679 = vmatprep.subr.bf16.mxu0 0
        %680 = vmatpush1.bf16.msra.mxu0 %v646
        %681 = vmatprep.subr.bf16.mxu0 0
        %682 = vmatpush1.bf16.msra.mxu0 %v647
        %683 = vmatprep.subr.bf16.mxu0 0
        %684 = vmatpush1.bf16.msra.mxu0 %v648
        %685 = vmatprep.subr.bf16.mxu0 0
        %686 = vmatpush1.bf16.msra.mxu0 %v649
        %687 = vmatprep.subr.bf16.mxu0 0
        %688 = vmatpush1.bf16.msra.mxu0 %v650
        %689 = vmatprep.subr.bf16.mxu0 0
        %690 = vmatpush1.bf16.msra.mxu0 %v651
        %691 = vmatprep.subr.bf16.mxu0 0
        %692 = vmatpush1.bf16.msra.mxu0 %v652
        %693 = vmatprep.subr.bf16.mxu0 0
        %694 = vmatpush1.bf16.msra.mxu0 0
        %695 = vmatprep.subr.bf16.mxu0 0
        %696 = vmatpush1.bf16.msra.mxu0 0
        %697 = vmatprep.subr.bf16.mxu0 0
        %698 = vmatpush1.bf16.msra.mxu0 0
        %699 = vmatprep.subr.bf16.mxu0 0
        %700 = vmatpush1.bf16.msra.mxu0 0
        %701 = vmatprep.subr.bf16.mxu0 0
        %702 = vmatpush1.bf16.msra.mxu0 0
        %703 = vmatprep.subr.bf16.mxu0 0
        %704 = vmatpush1.bf16.msra.mxu0 0
        %705 = vmatprep.subr.bf16.mxu0 0
        %706 = vmatpush1.bf16.msra.mxu0 0
        %707 = vmatprep.subr.bf16.mxu0 0
        %708 = vmatpush1.bf16.msra.mxu0 0
        %709 = vmatprep.mubr.bf16.mxu0 0
        %710 = vmatmul.mubr.bf16.gmra.mrb[0].mxu0 %v669
        %v711 = vpop.f32.mrb[0].mxu0
        %v712 = vadd.f32 0.0, %v711
        %v713 = vpop.f32.mrb[0].mxu0
        %v714 = vpop.f32.mrb[0].mxu0
        %v715 = vadd.f32 0.0, %v714
        %v716 = vpop.f32.mrb[0].mxu0
        %717 = vmatprep.mubr.bf16.mxu0 0
        %718 = vmatmul.mubr.bf16.gmra.mrb[0].mxu0 %v670
        %v719 = vpop.f32.mrb[0].mxu0
        %v720 = vadd.f32 0.0, %v719
        %v721 = vpop.f32.mrb[0].mxu0
        %v722 = vpop.f32.mrb[0].mxu0
        %v723 = vadd.f32 0.0, %v722
        %v724 = vpop.f32.mrb[0].mxu0
        %725 = vmatprep.mubr.bf16.mxu0 0
        %726 = vmatmul.mubr.bf16.gmra.mrb[0].mxu0 %v671
        %v727 = vpop.f32.mrb[0].mxu0
        %v728 = vadd.f32 0.0, %v727
        %v729 = vpop.f32.mrb[0].mxu0
        %v730 = vpop.f32.mrb[0].mxu0
        %v731 = vadd.f32 0.0, %v730
        %v732 = vpop.f32.mrb[0].mxu0
        %733 = vmatprep.mubr.bf16.mxu0 0
        %734 = vmatmul.mubr.bf16.gmra.mrb[0].mxu0 %v672
        %v735 = vpop.f32.mrb[0].mxu0
        %v736 = vadd.f32 0.0, %v735
        %v737 = vpop.f32.mrb[0].mxu0
        %v738 = vpop.f32.mrb[0].mxu0
        %v739 = vadd.f32 0.0, %v738
        %v740 = vpop.f32.mrb[0].mxu0
        %741 = vdwg.mxu0
        %v742 = vadd.f32 %v629, %v712
        %v743 = vadd.f32 %v630, %v715
        %v744 = vadd.f32 %v631, %v720
        %v745 = vadd.f32 %v632, %v723
        %v746 = vadd.f32 %v633, %v728
        %v747 = vadd.f32 %v634, %v731
        %v748 = vadd.f32 %v635, %v736
        %v749 = vadd.f32 %v636, %v739
        %750 = vst [vmem:[#allocation2] sm:$0xff] %v742
        %751 = vst [vmem:[#allocation2 + $0x8] sm:$0xff] %v743
        %752 = vst [vmem:[#allocation2 + $0x10] sm:$0xff] %v744
        %753 = vst [vmem:[#allocation2 + $0x18] sm:$0xff] %v745
        %754 = vst [vmem:[#allocation2 + $0x20] sm:$0xff] %v746
        %755 = vst [vmem:[#allocation2 + $0x28] sm:$0xff] %v747
        %756 = vst [vmem:[#allocation2 + $0x30] sm:$0xff] %v748
        %757 = vst [vmem:[#allocation2 + $0x38] sm:$0xff] %v749
        // Predicated region
        $region49: #{tpu_custom_call.1} parent=43 // pred_check
          %p758 = pneg %p343
        $region50: #{tpu_custom_call.1} parent=43 // pred_check_branch
          %760 = sbr.rel (%p758) target = $region52
        $region51: #{tpu_custom_call.1} parent=43 // pred_region
          %v761 = vld [vmem:[#allocation2] sm:$0xff]
          %v762 = vld [vmem:[#allocation2 + $0x8] sm:$0xff]
          %v763 = vld [vmem:[#allocation2 + $0x10] sm:$0xff]
          %v764 = vld [vmem:[#allocation2 + $0x18] sm:$0xff]
          %v765 = vld [vmem:[#allocation2 + $0x20] sm:$0xff]
          %v766 = vld [vmem:[#allocation2 + $0x28] sm:$0xff]
          %v767 = vld [vmem:[#allocation2 + $0x30] sm:$0xff]
          %v768 = vld [vmem:[#allocation2 + $0x38] sm:$0xff]
          %v769 = vld [vmem:[%s339] sm:$0xff]
          %v770 = vld [vmem:[%s339 + $0x8] sm:$0xff]
          %v771 = vld [vmem:[%s339 + $0x10] sm:$0xff]
          %v772 = vld [vmem:[%s339 + $0x18] sm:$0xff]
          %v773 = vld [vmem:[%s339 + $0x20] sm:$0xff]
          %v774 = vld [vmem:[%s339 + $0x28] sm:$0xff]
          %v775 = vld [vmem:[%s339 + $0x30] sm:$0xff]
          %v776 = vld [vmem:[%s339 + $0x38] sm:$0xff]
          %778 = vset.pattern.permute.xlu0 0
          %779 = vperm.xlu0 %778, %v769
          %v780 = vpop.permute.xlu0 %779
          %783 = vset.pattern.permute.xlu0 0
          %784 = vperm.xlu0 %783, %v770
          %v785 = vpop.permute.xlu0 %784
          %788 = vset.pattern.permute.xlu0 0
          %789 = vperm.xlu0 %788, %v771
          %v790 = vpop.permute.xlu0 %789
          %793 = vset.pattern.permute.xlu0 0
          %794 = vperm.xlu0 %793, %v772
          %v795 = vpop.permute.xlu0 %794
          %798 = vset.pattern.permute.xlu0 0
          %799 = vperm.xlu0 %798, %v773
          %v800 = vpop.permute.xlu0 %799
          %803 = vset.pattern.permute.xlu0 0
          %804 = vperm.xlu0 %803, %v774
          %v805 = vpop.permute.xlu0 %804
          %808 = vset.pattern.permute.xlu0 0
          %809 = vperm.xlu0 %808, %v775
          %v810 = vpop.permute.xlu0 %809
          %813 = vset.pattern.permute.xlu0 0
          %814 = vperm.xlu0 %813, %v776
          %v815 = vpop.permute.xlu0 %814
          %v817 = vmul.f32 %v761, %v780
          %v818 = vmul.f32 %v762, %v785
          %v819 = vmul.f32 %v763, %v790
          %v820 = vmul.f32 %v764, %v795
          %v821 = vmul.f32 %v765, %v800
          %v822 = vmul.f32 %v766, %v805
          %v823 = vmul.f32 %v767, %v810
          %v824 = vmul.f32 %v768, %v815
          %v825 = vld [vmem:[%s5] sm:$0x1]
          %v827 = vlaneseq
          %v828 = vshrl.u32 %v827, 7
          %v829 = vsub.s32 0, %v828
          %v830 = vrot.slane %v825, %v829
          %v832 = vadd.f32 %v817, %v830
          %v833 = vadd.f32 %v818, %v830
          %v834 = vadd.f32 %v819, %v830
          %v835 = vadd.f32 %v820, %v830
          %v836 = vadd.f32 %v821, %v830
          %v837 = vadd.f32 %v822, %v830
          %v838 = vadd.f32 %v823, %v830
          %v839 = vadd.f32 %v824, %v830
          %840 = vst [vmem:[%s313] sm:$0xff] %v832
          %841 = vst [vmem:[%s313 + $0x8] sm:$0xff] %v833
          %842 = vst [vmem:[%s313 + $0x10] sm:$0xff] %v834
          %843 = vst [vmem:[%s313 + $0x18] sm:$0xff] %v835
          %844 = vst [vmem:[%s313 + $0x20] sm:$0xff] %v836
          %845 = vst [vmem:[%s313 + $0x28] sm:$0xff] %v837
          %846 = vst [vmem:[%s313 + $0x30] sm:$0xff] %v838
          %847 = vst [vmem:[%s313 + $0x38] sm:$0xff] %v839
        $region52: #{tpu_custom_call.1} parent=43 // pred_fallthru
          _
        %s848 = sand.u32 %s188, 1
        %s849 = scalar_lea.sflag [#allocation4], %s848
        %s850 = sand.u32 %s188, 1
        %s851 = smul.addr %s850, 64
        %s852 = scalar_lea.vmem [#allocation3], %s851
        // Predicated region
        $region53: #{tpu_custom_call.1} parent=43 // pred_check
          %p853 = pneg %p198
        $region54: #{tpu_custom_call.1} parent=43 // pred_check_branch
          %855 = sbr.rel (%p853) target = $region56
        $region55: #{tpu_custom_call.1} parent=43 // pred_region
          %s856 = smul.u32 8, %s24
          %s858 = ssub.s32 1024, 1024
          %859 = vsyncadd %s849, %s858
          %s860 = smul.addr %s856, 128
          %s861 = scalar_lea.hbm %s6, %s860
          %s862 = sshll.u32 %s852, 4
          %s863 = int_to_ptr.vmem [resolvable:$true] %s862
          %868 = dma.vmem_to_hbm [thread:$0]  %s863, 1024, %s861, %s849, 128, 128, 8
        $region56: #{tpu_custom_call.1} parent=43 // pred_fallthru
          _
      $region44: #{tpu_custom_call.1} parent=5 // pred_fallthru
        _
      %p869 = scmp.le.s32.totalorder 2, %s15
      // Predicated region
      $region57: #{tpu_custom_call.1} parent=5 // pred_check
        %p870 = pneg %p869
      $region58: #{tpu_custom_call.1} parent=5 // pred_check_branch
        %872 = sbr.rel (%p870) target = $region60
      $region59: #{tpu_custom_call.1} parent=5 // pred_region
        %s873 = ssub.s32 %s15, 2
        // Predicated region
        $region61: #{tpu_custom_call.1} parent=59 // pred_check
          %p874 = pneg %p204
        $region62: #{tpu_custom_call.1} parent=59 // pred_check_branch
          %876 = sbr.rel (%p874) target = $region64
        $region63: #{tpu_custom_call.1} parent=59 // pred_region
          %s877 = sand.u32 %s189, 1
          %s878 = scalar_lea.sflag [#allocation4], %s877
          %s879 = sand.u32 %s189, 1
          %s880 = smul.addr %s879, 64
          %s881 = scalar_lea.vmem [#allocation3], %s880
          %882 = dma.done %s878, 1024
        $region64: #{tpu_custom_call.1} parent=59 // pred_fallthru
          _
      $region60: #{tpu_custom_call.1} parent=5 // pred_fallthru
        _
    $region6: #{tpu_custom_call.1} parent=1 // loop_footer
      %s19 = sadd.s32 1, %s15
    $region7: #{tpu_custom_call.1} parent=1 // loop_footer_branch
      %14 = sbr.rel target = $region3
    $region8: #{tpu_custom_call.1} parent=1 // loop_exit
      _
    %883 = vsyncpa [#allocation4], 1
    %s884 = scalar_lea.sflag [#allocation4], 1
    %885 = vsyncpa %s884, 1

</llo_original>
